<compile_context>
chip_gen: v5e
topology: v5e:2x2
jax: 0.10.0
libtpu: 0.0.40
codegen_flags: <defaults>
</compile_context>

<pallas_src>
import functools

import jax
import jax.numpy as jnp
from jax.experimental import pallas as pl
from jax.experimental.pallas import tpu as pltpu


# ---------------------------------------------------------------------------
# Kernels
# ---------------------------------------------------------------------------

def _kernel_classwise(f_ref, g_ref, o_ref, *, C: int, F: int):
    """F % 128 == 0: per-class lane-aligned, unmasked F-wide stores.

    out[:, c*F:(c+1)*F] = g[:, c:c+1] * f  for each class c (static unroll;
    CDAN only routes through MultiLinearMap when C*F <= 4096, so C is small).
    f_ref is re-read per class to keep source-level live ranges small; the
    compiler is free to CSE the load.
    """
    for c in range(C):
        f = f_ref[...]                    # (TB, F)
        gc = g_ref[:, c:c + 1]            # (TB, 1), broadcast over lanes
        o_ref[:, c * F:(c + 1) * F] = (gc * f).astype(o_ref.dtype)


def _kernel_fullrow(f_ref, g_ref, o_ref, *, C: int, F: int):
    """F % 128 != 0: build the full (TB, C*F) row in vregs (lane-dim
    concatenate of the C per-class products) and issue ONE full-tile store,
    instead of C lane-misaligned masked stores."""
    f = f_ref[...]                        # (TB, F)
    g = g_ref[...]                        # (TB, C)
    pieces = [g[:, c:c + 1] * f for c in range(C)]        # C x (TB, F)
    slab = jnp.concatenate(pieces, axis=-1)               # (TB, C*F)
    o_ref[...] = slab.astype(o_ref.dtype)


# ---------------------------------------------------------------------------
# Generation-aware tiling
# ---------------------------------------------------------------------------

def _round_up(x: int, m: int) -> int:
    return ((x + m - 1) // m) * m


def _tpu_generation():
    """Return (vmem_capacity_bytes, num_tensorcores) with safe fallbacks."""
    vmem_cap = 64 * 1024 * 1024           # conservative (v7x-sized) default
    try:
        info = pltpu.get_tpu_info()
        vmem_cap = int(getattr(info, "vmem_capacity_bytes", vmem_cap))
    except Exception:
        pass
    num_cores = 1
    try:
        kind = jax.devices()[0].device_kind.lower()
        # Megacore parts (2 TensorCores behind one device): v7x, v4-style.
        if "v7" in kind or "v4" in kind:
            num_cores = 2
    except Exception:
        pass
    return vmem_cap, num_cores


def _generation_budgets(vmem_cap: int):
    if vmem_cap >= 96 * 1024 * 1024:
        # v5e / v6e: 128 MiB physical VMEM -> larger slabs, fewer grid steps.
        return {"target_out": 8 << 20, "resident_cap": 48 << 20,
                "phys_cap": 100 << 20}
    # v7x: 64 MiB VMEM per TensorCore -> keep resident (double-buffered
    # in+out) well under the physical limit.
    return {"target_out": 6 << 20, "resident_cap": 26 << 20,
            "phys_cap": 48 << 20}


def _pick_tiling(B: int, C: int, F: int, itemsize: int,
                 vmem_cap: int, num_cores: int, batch_tile=None):
    """Choose (TB, vmem_limit_bytes) for the batch-tiled grid."""
    budgets = _generation_budgets(vmem_cap)
    row_out = C * F * itemsize
    row_all = (F + C + C * F) * itemsize     # in + out bytes per batch row

    # Hard feasibility check (was only a comment before): even the minimum
    # batch tile must fit the per-generation VMEM budget.
    min_tb = B if B <= 8 else 8
    if 2 * min_tb * row_all + (2 << 20) > budgets["phys_cap"]:
        raise ValueError(
            f"MultiLinearMap row is too large (C*F={C * F} elements): even the "
            f"minimum batch tile of {min_tb} rows needs "
            f"{2 * min_tb * row_all} resident VMEM bytes. Fuse this op with its "
            f"consumer instead of materializing the (B, C*F) tensor.")

    if batch_tile is not None:
        tb = min(int(batch_tile), B)
        if tb != B and (tb <= 0 or tb % 8 != 0):
            raise ValueError("batch_tile must equal B or be a positive "
                             "multiple of 8")
    elif B <= 8:
        tb = B
    else:
        # Size the tile by bytes: ~target_out bytes of output per grid step,
        # capped so double-buffered in+out blocks stay under resident_cap.
        tb_max = min(budgets["target_out"] // max(row_out, 1),
                     budgets["resident_cap"] // max(2 * row_all, 1))
        tb_max = max(8, min(tb_max, B))
        if num_cores > 1:
            # Megacore (v7x): grid length a multiple of num_cores with
            # near-equal blocks -> smallest k whose block height fits.
            tb_max8 = max(8, (tb_max // 8) * 8)
            k = 1
            while True:
                cand = _round_up(pl.cdiv(B, num_cores * k), 8)
                if cand <= tb_max8:
                    tb = cand
                    break
                k += 1
        else:
            # Single TensorCore (v5e/v6e): no reason to force multiple steps.
            tb = B if tb_max >= B else max(8, (tb_max // 8) * 8)

    resident = 2 * tb * row_all              # double-buffered inputs + output
    vmem_limit = int(min(budgets["phys_cap"],
                         max(32 << 20, resident + (4 << 20))))
    return int(tb), vmem_limit


# ---------------------------------------------------------------------------
# Public wrapper
# ---------------------------------------------------------------------------

def multi_linear_map(f: jax.Array, g: jax.Array, *, batch_tile=None) -> jax.Array:
    """Pallas implementation of MultiLinearMap.forward.

    f: (B, F), g: (B, C) -> (B, C*F), flattened row-major over (C, F),
    matching torch.bmm(g.unsqueeze(2), f.unsqueeze(1)).view(B, -1).
    """
    B, Fdim = f.shape
    Bg, Cdim = g.shape
    if B != Bg:
        raise ValueError(f"batch dims must match, got {B} vs {Bg}")

    out_dtype = jnp.result_type(f.dtype, g.dtype)
    itemsize = jnp.dtype(out_dtype).itemsize

    vmem_cap, num_cores = _tpu_generation()
    TB, vmem_limit = _pick_tiling(B, Cdim, Fdim, itemsize, vmem_cap,
                                  num_cores, batch_tile=batch_tile)

    if Fdim % 128 == 0:
        kernel = functools.partial(_kernel_classwise, C=Cdim, F=Fdim)
    else:
        kernel = functools.partial(_kernel_fullrow, C=Cdim, F=Fdim)

    cost = pl.CostEstimate(
        flops=B * Cdim * Fdim,
        transcendentals=0,
        bytes_accessed=itemsize * B * (Fdim + Cdim + Cdim * Fdim),
    )

    return pl.pallas_call(
        kernel,
        out_shape=jax.ShapeDtypeStruct((B, Cdim * Fdim), out_dtype),
        grid_spec=pltpu.PrefetchScalarGridSpec(
            num_scalar_prefetch=0,
            grid=(pl.cdiv(B, TB),),
            in_specs=[
                pl.BlockSpec((TB, Fdim), lambda i: (i, 0)),
                pl.BlockSpec((TB, Cdim), lambda i: (i, 0)),
            ],
            out_specs=pl.BlockSpec((TB, Cdim * Fdim), lambda i: (i, 0)),
        ),
        compiler_params=pltpu.CompilerParams(
            dimension_semantics=("parallel",),
            vmem_limit_bytes=vmem_limit,
        ),
        cost_estimate=cost,
    )(f, g)


def _reference(f, g):
    # Mirrors torch.bmm(g[:, :, None], f[:, None, :]).view(B, -1)
    return (g[:, :, None] * f[:, None, :]).reshape(f.shape[0], -1)


if __name__ == "__main__":
    # Case 1: small shape from the module spec; F % 128 != 0 exercises the
    # single full-tile-store (concatenate) path with a tiny one-block grid.
    kf, kg = jax.random.split(jax.random.PRNGKey(0))
    B, Fdim, Cdim = 2, 32, 8
    f = jax.random.normal(kf, (B, Fdim), dtype=jnp.float32)
    g = jax.random.normal(kg, (B, Cdim), dtype=jnp.float32)
    out = multi_linear_map(f, g)
    jax.block_until_ready(out)
    assert out.shape == (B, Cdim * Fdim), out.shape
    assert jnp.allclose(out, _reference(f, g), atol=1e-6, rtol=1e-6), \
        "mismatch vs reference (small case)"

    # Case 2: F % 128 == 0 exercises the lane-aligned per-class store path,
    # first with auto tiling, then with a forced small tile to cover the
    # multi-step grid + ragged last block writeback.
    kf2, kg2 = jax.random.split(jax.random.PRNGKey(1))
    B2, F2, C2 = 20, 128, 5
    f2 = jax.random.normal(kf2, (B2, F2), dtype=jnp.float32)
    g2 = jax.random.normal(kg2, (B2, C2), dtype=jnp.float32)
    ref2 = _reference(f2, g2)

    out2 = multi_linear_map(f2, g2)                      # auto tiling
    jax.block_until_ready(out2)
    assert out2.shape == (B2, C2 * F2), out2.shape
    assert jnp.allclose(out2, ref2, atol=1e-6, rtol=1e-6), \
        "mismatch vs reference (auto-tiled case)"

    out3 = multi_linear_map(f2, g2, batch_tile=8)        # 3-step ragged grid
    jax.block_until_ready(out3)
    assert jnp.allclose(out3, ref2, atol=1e-6, rtol=1e-6), \
        "mismatch vs reference (forced-tile ragged case)"

    print("KERNEL_OK")
</pallas_src>

<mosaic_0001>
module attributes {stable_mosaic.version = 11 : i64} {
  func.func @_kernel_fullrow(%arg0: i32, %arg1: memref<2x32xf32, #tpu.memory_space<vmem>>, %arg2: memref<2x8xf32, #tpu.memory_space<vmem>>, %arg3: memref<2x256xf32, #tpu.memory_space<vmem>>) attributes {dimension_semantics = [#tpu.dimension_semantics<parallel>], iteration_bounds = array<i64: 1>, scalar_prefetch = 0 : i64, scratch_operands = 0 : i64, tpu.core_type = #tpu.core_type<tc>, window_params = [{transform_indices = @transform_0, window_bounds = array<i64: 2, 32>}, {transform_indices = @transform_1, window_bounds = array<i64: 2, 8>}, {transform_indices = @transform_2, window_bounds = array<i64: 2, 256>}]} {
    %c0 = arith.constant 0 : index
    %c0_0 = arith.constant 0 : index
    %0 = vector.load %arg1[%c0, %c0_0] : memref<2x32xf32, #tpu.memory_space<vmem>>, vector<2x32xf32>
    %c0_1 = arith.constant 0 : index
    %c0_2 = arith.constant 0 : index
    %1 = vector.load %arg2[%c0_1, %c0_2] : memref<2x8xf32, #tpu.memory_space<vmem>>, vector<2x8xf32>
    %2 = vector.extract_strided_slice %1 {offsets = [0, 0], sizes = [2, 1], strides = [1, 1]} : vector<2x8xf32> to vector<2x1xf32>
    %3 = vector.broadcast %2 : vector<2x1xf32> to vector<2x32xf32>
    %4 = arith.mulf %3, %0 : vector<2x32xf32>
    %5 = vector.extract_strided_slice %1 {offsets = [0, 1], sizes = [2, 1], strides = [1, 1]} : vector<2x8xf32> to vector<2x1xf32>
    %6 = vector.broadcast %5 : vector<2x1xf32> to vector<2x32xf32>
    %7 = arith.mulf %6, %0 : vector<2x32xf32>
    %8 = vector.extract_strided_slice %1 {offsets = [0, 2], sizes = [2, 1], strides = [1, 1]} : vector<2x8xf32> to vector<2x1xf32>
    %9 = vector.broadcast %8 : vector<2x1xf32> to vector<2x32xf32>
    %10 = arith.mulf %9, %0 : vector<2x32xf32>
    %11 = vector.extract_strided_slice %1 {offsets = [0, 3], sizes = [2, 1], strides = [1, 1]} : vector<2x8xf32> to vector<2x1xf32>
    %12 = vector.broadcast %11 : vector<2x1xf32> to vector<2x32xf32>
    %13 = arith.mulf %12, %0 : vector<2x32xf32>
    %14 = vector.extract_strided_slice %1 {offsets = [0, 4], sizes = [2, 1], strides = [1, 1]} : vector<2x8xf32> to vector<2x1xf32>
    %15 = vector.broadcast %14 : vector<2x1xf32> to vector<2x32xf32>
    %16 = arith.mulf %15, %0 : vector<2x32xf32>
    %17 = vector.extract_strided_slice %1 {offsets = [0, 5], sizes = [2, 1], strides = [1, 1]} : vector<2x8xf32> to vector<2x1xf32>
    %18 = vector.broadcast %17 : vector<2x1xf32> to vector<2x32xf32>
    %19 = arith.mulf %18, %0 : vector<2x32xf32>
    %20 = vector.extract_strided_slice %1 {offsets = [0, 6], sizes = [2, 1], strides = [1, 1]} : vector<2x8xf32> to vector<2x1xf32>
    %21 = vector.broadcast %20 : vector<2x1xf32> to vector<2x32xf32>
    %22 = arith.mulf %21, %0 : vector<2x32xf32>
    %23 = vector.extract_strided_slice %1 {offsets = [0, 7], sizes = [2, 1], strides = [1, 1]} : vector<2x8xf32> to vector<2x1xf32>
    %24 = vector.broadcast %23 : vector<2x1xf32> to vector<2x32xf32>
    %25 = arith.mulf %24, %0 : vector<2x32xf32>
    %26 = tpu.concatenate %4, %7, %10, %13, %16, %19, %22, %25 in 1 : vector<2x32xf32>, vector<2x32xf32>, vector<2x32xf32>, vector<2x32xf32>, vector<2x32xf32>, vector<2x32xf32>, vector<2x32xf32>, vector<2x32xf32> -> vector<2x256xf32>
    %c0_3 = arith.constant 0 : index
    %c0_4 = arith.constant 0 : index
    %27 = vector.load %arg3[%c0_3, %c0_4] : memref<2x256xf32, #tpu.memory_space<vmem>>, vector<2x256xf32>
    tpu.vector_store %arg3[%c0_3, %c0_4], %26 {strides = array<i32>} : memref<2x256xf32, #tpu.memory_space<vmem>>, vector<2x256xf32>,
    return
  }
  func.func @transform_0(%arg0: i32) -> (i32, i32) {
    %c0_i32 = arith.constant 0 : i32
    %c0_i32_0 = arith.constant 0 : i32
    return %arg0, %c0_i32 : i32, i32
  }
  func.func @transform_1(%arg0: i32) -> (i32, i32) {
    %c0_i32 = arith.constant 0 : i32
    %c0_i32_0 = arith.constant 0 : i32
    return %arg0, %c0_i32 : i32, i32
  }
  func.func @transform_2(%arg0: i32) -> (i32, i32) {
    %c0_i32 = arith.constant 0 : i32
    %c0_i32_0 = arith.constant 0 : i32
    return %arg0, %c0_i32 : i32, i32
  }
}

</mosaic_0001>

<llo_original>
// kernel: tpu_custom_call.1
$region0: #{tpu_custom_call.1}
  #allocation0 [shape = 'u32[]', space=smem, size = 0x4, offset = 0x4, fixed_abs, tag = 'smem constant byte address 0x4 - core index']
  #allocation1 [shape = 'u32[72,128]{1,0:T(1,128)}', space=vmem, size = 0x9000, scoped, tag = 'internal scratch']
  %s0 = inlined_call_operand.hbm [shape: f32[2,32], index: 0, kind: input, shape index: {}]
  %s1 = inlined_call_operand.hbm [shape: f32[2,8], index: 1, kind: input, shape index: {}]
  %s2 = inlined_call_operand.hbm [shape: f32[2,256], index: 2, kind: output, shape index: {}]
  %s3 = sld [smem:[#allocation0]]
  $region26: #{tpu_custom_call.1} parent=0
    _
  %s5 = ssub.s32 1, %s3
  %s6 = scalar_select 0, %s5, %s3
  $region1: #{tpu_custom_call.1} parent=0
    #allocation2 [shape = 'u8[1024]{0}', space=vmem, size = 0x400, scoped, tag = 'input window, operand 0, single buffered']
    #allocation3 [shape = 's32[1]{0}', space=sflag, size = 0x4, scoped, tag = 'scoped memory for tpu_custom_call.1']
    #allocation4 [shape = 's32[1]{0}', space=sflag, size = 0x4, scoped, tag = 'scoped memory for tpu_custom_call.1']
    #allocation5 [shape = 'u8[1024]{0}', space=vmem, size = 0x400, scoped, tag = 'input window, operand 1, single buffered']
    #allocation6 [shape = 's32[1]{0}', space=sflag, size = 0x4, scoped, tag = 'scoped memory for tpu_custom_call.1']
    #allocation7 [shape = 'u8[2048]{0}', space=vmem, size = 0x800, scoped, tag = 'output window, operand 0, single buffered']
    %7 = vsyncpa [#allocation3], 0
    %8 = vsyncpa [#allocation6], 0
    %9 = vsyncpa [#allocation4], 0
    // Predicated region
    $region2: #{tpu_custom_call.1} parent=1 // pred_check
      _
    $region3: #{tpu_custom_call.1} parent=1 // pred_check_branch
      %11 = sbr.rel (0) target = $region5
    $region4: #{tpu_custom_call.1} parent=1 // pred_region
      %13 = vsyncadd [#allocation3], 0
      %s15 = sshll.u32 %s0, 4
      %s16 = int_to_ptr.hbm [resolvable:$true] %s15
      %s17 = sshll.u32 [#allocation2], 4
      %s18 = int_to_ptr.vmem [resolvable:$true] %s17
      %20 = dma.hbm_to_vmem [thread:$0]  %s16, 32, %s18, [#allocation3]
    $region5: #{tpu_custom_call.1} parent=1 // pred_fallthru
      _
    // Predicated region
    $region6: #{tpu_custom_call.1} parent=1 // pred_check
      _
    $region7: #{tpu_custom_call.1} parent=1 // pred_check_branch
      %22 = sbr.rel (0) target = $region9
    $region8: #{tpu_custom_call.1} parent=1 // pred_region
      %24 = vsyncadd [#allocation6], 0
      %s26 = sshll.u32 %s1, 4
      %s27 = int_to_ptr.hbm [resolvable:$true] %s26
      %s28 = sshll.u32 [#allocation5], 4
      %s29 = int_to_ptr.vmem [resolvable:$true] %s28
      %31 = dma.hbm_to_vmem [thread:$0]  %s27, 32, %s29, [#allocation6]
    $region9: #{tpu_custom_call.1} parent=1 // pred_fallthru
      _
    // Predicated region
    $region10: #{tpu_custom_call.1} parent=1 // pred_check
      _
    $region11: #{tpu_custom_call.1} parent=1 // pred_check_branch
      %33 = sbr.rel (0) target = $region13
    $region12: #{tpu_custom_call.1} parent=1 // pred_region
      %35 = dma.done [#allocation3], 32
    $region13: #{tpu_custom_call.1} parent=1 // pred_fallthru
      _
    // Predicated region
    $region14: #{tpu_custom_call.1} parent=1 // pred_check
      _
    $region15: #{tpu_custom_call.1} parent=1 // pred_check_branch
      %37 = sbr.rel (0) target = $region17
    $region16: #{tpu_custom_call.1} parent=1 // pred_region
      %39 = dma.done [#allocation6], 32
    $region17: #{tpu_custom_call.1} parent=1 // pred_fallthru
      _
    %v40 = vld [vmem:[#allocation2] sm:$0x3]
    %v41 = vld [vmem:[#allocation5] sm:$0x3]
    %43 = vset.pattern.permute.xlu0 0
    %44 = vperm.xlu0 %43, %v41
    %v45 = vpop.permute.xlu0 %44
    %v47 = vmul.f32 %v45, %v40
    %48 = vset.pattern.permute.xlu0 1
    %49 = vperm.xlu0 %48, %v41
    %v50 = vpop.permute.xlu0 %49
    %v52 = vmul.f32 %v50, %v40
    %53 = vset.pattern.permute.xlu0 2
    %54 = vperm.xlu0 %53, %v41
    %v55 = vpop.permute.xlu0 %54
    %v57 = vmul.f32 %v55, %v40
    %58 = vset.pattern.permute.xlu0 3
    %59 = vperm.xlu0 %58, %v41
    %v60 = vpop.permute.xlu0 %59
    %v62 = vmul.f32 %v60, %v40
    %63 = vset.pattern.permute.xlu0 4
    %64 = vperm.xlu0 %63, %v41
    %v65 = vpop.permute.xlu0 %64
    %v67 = vmul.f32 %v65, %v40
    %68 = vset.pattern.permute.xlu0 5
    %69 = vperm.xlu0 %68, %v41
    %v70 = vpop.permute.xlu0 %69
    %v72 = vmul.f32 %v70, %v40
    %73 = vset.pattern.permute.xlu0 6
    %74 = vperm.xlu0 %73, %v41
    %v75 = vpop.permute.xlu0 %74
    %v77 = vmul.f32 %v75, %v40
    %78 = vset.pattern.permute.xlu0 7
    %79 = vperm.xlu0 %78, %v41
    %v80 = vpop.permute.xlu0 %79
    %v82 = vmul.f32 %v80, %v40
    %84 = vrot.lane.b32.xlu0 %v52, 32
    %v85 = vpop.permute.xlu0 %84
    %88 = vrot.lane.b32.xlu0 %v57, 64
    %v89 = vpop.permute.xlu0 %88
    %92 = vrot.lane.b32.xlu0 %v62, 96
    %v93 = vpop.permute.xlu0 %92
    %96 = vrot.lane.b32.xlu0 %v72, 32
    %v97 = vpop.permute.xlu0 %96
    %100 = vrot.lane.b32.xlu0 %v77, 64
    %v101 = vpop.permute.xlu0 %100
    %104 = vrot.lane.b32.xlu0 %v82, 96
    %v105 = vpop.permute.xlu0 %104
    %vm107 = vcmask 261120
    %v108 = vsel %vm107, %v47, %v85
    %vm109 = vcmask 523264
    %v110 = vsel %vm109, %v108, %v89
    %vm111 = vcmask 785408
    %v112 = vsel %vm111, %v110, %v93
    %v113 = vsel %vm107, %v67, %v97
    %v114 = vsel %vm109, %v113, %v101
    %v115 = vsel %vm111, %v114, %v105
    %v118 = vrot.slane %v115, 6
    %vm119 = vcmask 1041408
    %v120 = vsel %vm119, %v112, %v118
    %122 = vst [vmem:[#allocation7] sm:$0xf] %v120
    // Predicated region
    $region18: #{tpu_custom_call.1} parent=1 // pred_check
      _
    $region19: #{tpu_custom_call.1} parent=1 // pred_check_branch
      %124 = sbr.rel (0) target = $region21
    $region20: #{tpu_custom_call.1} parent=1 // pred_region
      %126 = vsyncadd [#allocation4], 0
      %s128 = sshll.u32 [#allocation7], 4
      %s129 = int_to_ptr.vmem [resolvable:$true] %s128
      %s130 = sshll.u32 %s2, 4
      %s131 = int_to_ptr.hbm [resolvable:$true] %s130
      %133 = dma.vmem_to_hbm [thread:$0]  %s129, 64, %s131, [#allocation4]
    $region21: #{tpu_custom_call.1} parent=1 // pred_fallthru
      _
    // Predicated region
    $region22: #{tpu_custom_call.1} parent=1 // pred_check
      _
    $region23: #{tpu_custom_call.1} parent=1 // pred_check_branch
      %135 = sbr.rel (0) target = $region25
    $region24: #{tpu_custom_call.1} parent=1 // pred_region
      %137 = dma.done [#allocation4], 64
    $region25: #{tpu_custom_call.1} parent=1 // pred_fallthru
      _
    %138 = vsyncpa [#allocation3], 1
    %139 = vsyncpa [#allocation6], 1
    %140 = vsyncpa [#allocation4], 1

</llo_original>
